<compile_context>
chip_gen: v5e
topology: v5e:2x2
jax: 0.10.0
libtpu: 0.0.40
codegen_flags: <defaults>
</compile_context>

<pallas_src>
import math

import jax
import jax.numpy as jnp
from jax.experimental import pallas as pl
from jax.experimental.pallas import tpu as pltpu


def _build_pe_table(max_len: int, d_model: int) -> jnp.ndarray:
    """Deterministic sinusoidal PE table, identical math to the PyTorch __init__."""
    position = jnp.arange(0.0, max_len, dtype=jnp.float32)[:, None]          # (L, 1)
    div_term = jnp.exp(
        jnp.arange(0.0, d_model, 2.0, dtype=jnp.float32)
        * -(math.log(10000.0) / d_model)
    )                                                                          # (ceil(D/2),)
    angles = position * div_term                                               # (L, ceil(D/2))
    pe = jnp.zeros((max_len, d_model), dtype=jnp.float32)
    n_even = pe[:, 0::2].shape[-1]
    n_odd = pe[:, 1::2].shape[-1]
    pe = pe.at[:, 0::2].set(jnp.sin(angles)[:, :n_even])
    pe = pe.at[:, 1::2].set(jnp.cos(angles)[:, :n_odd])
    return pe                                                                  # (L, D)


def _pe_add_kernel(x_ref, pe_ref, o_ref):
    # Squeezed-batch path: all refs are (TS, TD) tiles.
    o_ref[...] = (x_ref[...] + pe_ref[...]).astype(o_ref.dtype)


def _pe_add_bcast_kernel(x_ref, pe_ref, o_ref):
    # Batch-blocked path: x/o are (Bb, TS, TD); PE is (TS, TD), broadcast over batch.
    o_ref[...] = (x_ref[...] + pe_ref[...][None, :, :]).astype(o_ref.dtype)


def positional_encoding_forward(
    x: jnp.ndarray,
    pe_table: jnp.ndarray,
    *,
    target_block_bytes: int = 4 * 1024 * 1024,
    in_place: bool = False,
) -> jnp.ndarray:
    """x: (B, S, D); pe_table: (max_len, D) with max_len >= S. Returns x + pe[:S]."""
    B, S, D = x.shape
    orig_shape = x.shape
    itemsize = x.dtype.itemsize
    # dtype-native sublane multiple: 8 for f32, 16 for bf16, 32 for int8/fp8.
    sub = max(8, 32 // itemsize)

    # ---- PE preparation: never astype the full (max_len, D) table per call ----
    if D % 128 != 0 and (S * D) % 128 == 0:
        # Lane-dense fold: stores become unmasked vst; one O(S*D) wrapper pass
        # that fuses the slice + cast + reshape.
        lanes = 128
        rows = (S * D) // lanes
        x_in = x.reshape(B, rows, lanes)                      # free (contiguous) reshape
        pe_in = pe_table[:S, :].astype(x.dtype).reshape(rows, lanes)
        Sw, Dw = rows, lanes
    else:
        # TODO(synk): when D % 128 != 0 and S*D % 128 != 0 the stores stay masked;
        #             pad d_model to a multiple of 128 upstream for lane-dense stores.
        x_in = x
        if pe_table.dtype == x.dtype:
            pe_in = pe_table                                  # full table, rows via index_map; zero wrapper traffic
        else:
            pe_in = pe_table[:S, :].astype(x.dtype)           # cast only the S rows we need
        Sw, Dw = S, D

    # ---- Lane tiling (bounds the footprint for very wide D) -------------------
    if Dw % 128 == 0:
        max_td = max(128, (target_block_bytes // max(1, sub * itemsize)) // 128 * 128)
        TD = Dw if Dw <= max_td else max_td
    else:
        TD = Dw
    n_lane = pl.cdiv(Dw, TD)

    # ---- Sequence tile ---------------------------------------------------------
    rows_target = max(sub, (target_block_bytes // max(1, TD * itemsize)) // sub * sub)
    TS = Sw if Sw <= rows_target else rows_target

    # ---- Batch blocking: fold several batch rows per step when (Sw, Dw) is small
    Bb = 1
    if TS == Sw and n_lane == 1:
        slab = Sw * Dw * itemsize
        Bb = max(1, min(B, target_block_bytes // max(1, slab)))

    # ---- Megacore: keep >= 2 grid steps so both v7x TensorCores get work -------
    if Bb >= B and n_lane == 1 and TS == Sw:
        if B >= 2:
            Bb = (B + 1) // 2
        elif Sw >= 2 * sub:
            TS = (((Sw + 1) // 2) + sub - 1) // sub * sub

    n_seq = pl.cdiv(Sw, TS)
    n_batch = pl.cdiv(B, Bb)

    # PE BlockSpec tiles whatever table we pass; a tiled TS must be a sublane
    # multiple, otherwise the block must equal the full PE dims -> slice once.
    if TS % sub != 0 and TS != pe_in.shape[0]:
        pe_in = pe_in[:Sw, :]

    # Grid ordered (seq, lane, batch) with batch innermost so the PE block index
    # is constant across the inner loop and is not re-DMA'd per batch block.
    grid = (n_seq, n_lane, n_batch)

    if Bb == 1:
        kernel = _pe_add_kernel
        x_spec = pl.BlockSpec((pl.Squeezed(), TS, TD), lambda j, l, b: (b, j, l))
        o_spec = pl.BlockSpec((pl.Squeezed(), TS, TD), lambda j, l, b: (b, j, l))
    else:
        kernel = _pe_add_bcast_kernel
        x_spec = pl.BlockSpec((Bb, TS, TD), lambda j, l, b: (b, j, l))
        o_spec = pl.BlockSpec((Bb, TS, TD), lambda j, l, b: (b, j, l))
    pe_spec = pl.BlockSpec((TS, TD), lambda j, l, b: (j, l))

    out = pl.pallas_call(
        kernel,
        out_shape=jax.ShapeDtypeStruct((B, Sw, Dw), x.dtype),
        grid_spec=pltpu.PrefetchScalarGridSpec(
            num_scalar_prefetch=0,
            grid=grid,
            in_specs=[x_spec, pe_spec],
            out_specs=o_spec,
        ),
        compiler_params=pltpu.CompilerParams(
            dimension_semantics=("parallel", "parallel", "parallel"),
            vmem_limit_bytes=48 * 1024 * 1024,
        ),
        cost_estimate=pl.CostEstimate(
            flops=B * Sw * Dw,
            transcendentals=0,
            bytes_accessed=(2 * B * Sw * Dw + Sw * Dw) * itemsize,
        ),
        # P8: write back into x's buffer when the caller donates it.
        input_output_aliases=({0: 0} if in_place else {}),
    )(x_in, pe_in)

    return out.reshape(orig_shape)


if __name__ == "__main__":
    # --- Check 1: small shapes matching the module's usage (B, S, D); exercises
    # the lane-dense fold path (D % 128 != 0, S*D % 128 == 0) -------------------
    B, S, D = 2, 8, 32
    MAX_LEN = 64
    DROPOUT_P = 0.1  # unused at inference (identity)

    key = jax.random.PRNGKey(0)
    x = jax.random.normal(key, (B, S, D), dtype=jnp.float32)
    pe_table = _build_pe_table(MAX_LEN, D)

    out = positional_encoding_forward(x, pe_table)
    out = jax.block_until_ready(out)
    ref = x + pe_table[:S, :][None, :, :]
    assert out.shape == (B, S, D)
    assert jnp.allclose(out, ref, atol=1e-6), "mismatch vs reference (check 1)"

    # --- Check 2: seq-tiled path, rows selected directly from the full PE table
    B2, S2, D2 = 3, 64, 128
    MAX_LEN2 = 128
    x2 = jax.random.normal(jax.random.PRNGKey(0), (B2, S2, D2), dtype=jnp.float32)
    pe_table2 = _build_pe_table(MAX_LEN2, D2)

    # small target block forces TS=32 -> grid (2, 1, 3)
    out2 = positional_encoding_forward(x2, pe_table2, target_block_bytes=16 * 1024)
    out2 = jax.block_until_ready(out2)
    ref2 = x2 + pe_table2[:S2, :][None, :, :]
    assert out2.shape == (B2, S2, D2)
    assert jnp.allclose(out2, ref2, atol=1e-6), "mismatch vs reference (check 2)"

    # --- Check 3: batch-blocked broadcast kernel + megacore split + in-place alias
    B3, S3, D3 = 4, 16, 128
    MAX_LEN3 = 32
    x3 = jax.random.normal(jax.random.PRNGKey(0), (B3, S3, D3), dtype=jnp.float32)
    pe_table3 = _build_pe_table(MAX_LEN3, D3)
    ref3 = x3 + pe_table3[:S3, :][None, :, :]          # computed before the aliased call

    out3 = positional_encoding_forward(x3, pe_table3, in_place=True)
    out3 = jax.block_until_ready(out3)
    assert out3.shape == (B3, S3, D3)
    assert jnp.allclose(out3, ref3, atol=1e-6), "mismatch vs reference (check 3)"

    # --- Check 4: bf16 activations (16-row sublane multiple, cast-only-the-slice PE)
    B4, S4, D4 = 2, 32, 128
    MAX_LEN4 = 64
    x4 = jax.random.normal(jax.random.PRNGKey(0), (B4, S4, D4), dtype=jnp.float32).astype(jnp.bfloat16)
    pe_table4 = _build_pe_table(MAX_LEN4, D4)          # f32 table, x is bf16

    out4 = positional_encoding_forward(x4, pe_table4)
    out4 = jax.block_until_ready(out4)
    ref4 = x4 + pe_table4[:S4, :].astype(jnp.bfloat16)[None, :, :]
    assert out4.shape == (B4, S4, D4)
    assert jnp.allclose(out4.astype(jnp.float32), ref4.astype(jnp.float32), atol=2e-2), \
        "mismatch vs reference (check 4)"

    print("KERNEL_OK")
</pallas_src>

<mosaic_0001>
module attributes {stable_mosaic.version = 11 : i64} {
  func.func @_pe_add_kernel(%arg0: i32, %arg1: i32, %arg2: i32, %arg3: memref<1x2x128xf32, #tpu.memory_space<vmem>>, %arg4: memref<2x128xf32, #tpu.memory_space<vmem>>, %arg5: memref<1x2x128xf32, #tpu.memory_space<vmem>>) attributes {dimension_semantics = [#tpu.dimension_semantics<parallel>, #tpu.dimension_semantics<parallel>, #tpu.dimension_semantics<parallel>], iteration_bounds = array<i64: 1, 1, 2>, scalar_prefetch = 0 : i64, scratch_operands = 0 : i64, tpu.core_type = #tpu.core_type<tc>, window_params = [{transform_indices = @transform_0, window_bounds = array<i64: 1, 2, 128>}, {transform_indices = @transform_1, window_bounds = array<i64: 2, 128>}, {transform_indices = @transform_2, window_bounds = array<i64: 1, 2, 128>}]} {
    %c0 = arith.constant 0 : index
    %c0_0 = arith.constant 0 : index
    %c0_1 = arith.constant 0 : index
    %0 = vector.load %arg3[%c0, %c0_0, %c0_1] : memref<1x2x128xf32, #tpu.memory_space<vmem>>, vector<1x2x128xf32>
    %1 = vector.shape_cast %0 : vector<1x2x128xf32> to vector<2x128xf32>
    %c0_2 = arith.constant 0 : index
    %c0_3 = arith.constant 0 : index
    %2 = vector.load %arg4[%c0_2, %c0_3] : memref<2x128xf32, #tpu.memory_space<vmem>>, vector<2x128xf32>
    %3 = arith.addf %1, %2 : vector<2x128xf32>
    %c0_4 = arith.constant 0 : index
    %c0_5 = arith.constant 0 : index
    %c0_6 = arith.constant 0 : index
    %4 = vector.load %arg5[%c0_4, %c0_5, %c0_6] : memref<1x2x128xf32, #tpu.memory_space<vmem>>, vector<1x2x128xf32>
    %5 = vector.shape_cast %4 : vector<1x2x128xf32> to vector<2x128xf32>
    %6 = vector.shape_cast %3 : vector<2x128xf32> to vector<1x2x128xf32>
    tpu.vector_store %arg5[%c0_4, %c0_5, %c0_6], %6 {strides = array<i32>} : memref<1x2x128xf32, #tpu.memory_space<vmem>>, vector<1x2x128xf32>,
    return
  }
  func.func @transform_0(%arg0: i32, %arg1: i32, %arg2: i32) -> (i32, i32, i32) {
    %c0_i32 = arith.constant 0 : i32
    return %arg2, %arg0, %arg1 : i32, i32, i32
  }
  func.func @transform_1(%arg0: i32, %arg1: i32, %arg2: i32) -> (i32, i32) {
    %c0_i32 = arith.constant 0 : i32
    return %arg0, %arg1 : i32, i32
  }
  func.func @transform_2(%arg0: i32, %arg1: i32, %arg2: i32) -> (i32, i32, i32) {
    %c0_i32 = arith.constant 0 : i32
    return %arg2, %arg0, %arg1 : i32, i32, i32
  }
}

</mosaic_0001>

<llo_original>
// kernel: tpu_custom_call.1
$region0: #{tpu_custom_call.1}
  #allocation0 [shape = 'u32[]', space=smem, size = 0x4, offset = 0x4, fixed_abs, tag = 'smem constant byte address 0x4 - core index']
  #allocation1 [shape = 'u32[72,128]{1,0:T(1,128)}', space=vmem, size = 0x9000, scoped, tag = 'internal scratch']
  %s0 = inlined_call_operand.hbm [shape: f32[2,2,128], index: 0, kind: input, shape index: {}]
  %s1 = inlined_call_operand.hbm [shape: f32[2,128], index: 1, kind: input, shape index: {}]
  %s2 = inlined_call_operand.hbm [shape: f32[2,2,128], index: 2, kind: output, shape index: {}]
  %s3 = sld [smem:[#allocation0]]
  $region49: #{tpu_custom_call.1} parent=0
    _
  %s5 = ssub.s32 1, %s3
  %s6 = scalar_select 0, %s5, %s3
  $region1: #{tpu_custom_call.1} parent=0
    #allocation2 [shape = 'u8[2048]{0}', space=vmem, size = 0x800, scoped, tag = 'input window, operand 0']
    #allocation3 [shape = 's32[2]{0}', space=sflag, size = 0x8, scoped, tag = 'scoped memory for tpu_custom_call.1']
    #allocation4 [shape = 's32[2]{0}', space=sflag, size = 0x8, scoped, tag = 'scoped memory for tpu_custom_call.1']
    #allocation5 [shape = 'u8[1024]{0}', space=vmem, size = 0x400, scoped, tag = 'input window, operand 1, single buffered']
    #allocation6 [shape = 's32[1]{0}', space=sflag, size = 0x4, scoped, tag = 'scoped memory for tpu_custom_call.1']
    #allocation7 [shape = 'u8[2048]{0}', space=vmem, size = 0x800, scoped, tag = 'output window, operand 0']
    %7 = vsyncpa [#allocation3], 0
    %s8 = scalar_lea.sflag [#allocation3], 1
    %9 = vsyncpa %s8, 0
    %10 = vsyncpa [#allocation6], 0
    %11 = vsyncpa [#allocation4], 0
    %s12 = scalar_lea.sflag [#allocation4], 1
    %13 = vsyncpa %s12, 0
    loop: start=0, step=1, limit=4
    $region2: #{tpu_custom_call.1} parent=1 // loop_pre_header
      _
    $region3: #{tpu_custom_call.1} parent=1 // loop_header
      %s15 = sphi 0, %s19
      %p16 = scmp.ge.s32.totalorder %s15, 4
      %s22 = sphi 0, %s41
      %s23 = sphi 0, %s37
      %s24 = sphi 0, %s33
      %s25 = sphi 0, %s22
      %s26 = sphi 0, %s23
      %s27 = sphi 0, %s24
      %s28 = sphi 0, %s25
      %s29 = sphi 0, %s26
      %s30 = sphi 0, %s27
      %s48 = sphi 0, %s50
      %s51 = sphi 0, %s48
      %s52 = sphi 0, %s51
      %s68 = sphi 0, %s52
      %s76 = sphi 0, %s78
      %s79 = sphi 0, %s76
      %s80 = sphi 0, %s79
      %s96 = sphi 0, %s80
      %s106 = sphi 0, %s108
      %s109 = sphi 0, %s106
      %s110 = sphi 0, %s109
      %s126 = sphi 0, %s110
    $region4: #{tpu_custom_call.1} parent=1 // loop_header_branch
      %18 = sbr.rel (%p16) target = $region8
    $region5: #{tpu_custom_call.1} parent=1 // loop_body
      %s20 = ssub.s32 %s15, 1
      %s21 = ssub.s32 %s15, 2
      %s31 = sadd.s32 1, %s24
      %p32 = scmp.ge.s32.totalorder %s31, 2
      %s33 = scalar_select %p32, 0, %s31
      %s34 = sadd.s32 1, %s23
      %s35 = scalar_select %p32, %s34, %s23
      %p36 = scmp.ge.s32.totalorder %s35, 1
      %s37 = scalar_select %p36, 0, %s35
      %s38 = sadd.s32 1, %s22
      %s39 = scalar_select %p36, %s38, %s22
      %p40 = scmp.ge.s32.totalorder %s39, 1
      %s41 = scalar_select %p40, 0, %s39
      %s42 = ssub.s32 %s24, %s33
      %s43 = ssub.s32 %s22, %s41
      %s44 = sor.u32 %s42, %s43
      %s45 = ssub.s32 %s23, %s37
      %s46 = sor.u32 %s44, %s45
      %p47 = scmp.eq.s32.totalorder %s46, 0
      %s49 = sadd.s32 %s48, 1
      %s50 = scalar_select %p47, %s48, %s49
      %p53 = pneg %p47
      %p54 = scmp.eq.s32.totalorder %s15, 1
      %p55 = por %p53, %p54
      %p56 = scmp.ne.s32.totalorder %s48, %s51
      %p57 = scmp.eq.s32.totalorder %s15, 0
      %p58 = por %p56, %p57
      %p59 = scmp.ne.s32.totalorder %s48, %s51
      %p60 = scmp.eq.s32.totalorder %s20, 1
      %p61 = por %p59, %p60
      %p62 = scmp.ne.s32.totalorder %s51, %s52
      %p63 = scmp.eq.s32.totalorder %s20, 0
      %p64 = por %p62, %p63
      %p65 = scmp.ne.s32.totalorder %s51, %s52
      %p66 = scmp.eq.s32.totalorder %s21, 1
      %p67 = por %p65, %p66
      %p69 = scmp.ne.s32.totalorder %s52, %s68
      %p70 = scmp.eq.s32.totalorder %s21, 0
      %p71 = por %p69, %p70
      %s72 = ssub.s32 %s22, %s41
      %s73 = ssub.s32 %s23, %s37
      %s74 = sor.u32 %s72, %s73
      %p75 = scmp.eq.s32.totalorder %s74, 0
      %s77 = sadd.s32 %s76, 1
      %s78 = scalar_select %p75, %s76, %s77
      %p81 = pneg %p75
      %p82 = scmp.eq.s32.totalorder %s15, 1
      %p83 = por %p81, %p82
      %p84 = scmp.ne.s32.totalorder %s76, %s79
      %p85 = scmp.eq.s32.totalorder %s15, 0
      %p86 = por %p84, %p85
      %p87 = scmp.ne.s32.totalorder %s76, %s79
      %p88 = scmp.eq.s32.totalorder %s20, 1
      %p89 = por %p87, %p88
      %p90 = scmp.ne.s32.totalorder %s79, %s80
      %p91 = scmp.eq.s32.totalorder %s20, 0
      %p92 = por %p90, %p91
      %p93 = scmp.ne.s32.totalorder %s79, %s80
      %p94 = scmp.eq.s32.totalorder %s21, 1
      %p95 = por %p93, %p94
      %p97 = scmp.ne.s32.totalorder %s80, %s96
      %p98 = scmp.eq.s32.totalorder %s21, 0
      %p99 = por %p97, %p98
      %s100 = ssub.s32 %s24, %s33
      %s101 = ssub.s32 %s22, %s41
      %s102 = sor.u32 %s100, %s101
      %s103 = ssub.s32 %s23, %s37
      %s104 = sor.u32 %s102, %s103
      %p105 = scmp.eq.s32.totalorder %s104, 0
      %s107 = sadd.s32 %s106, 1
      %s108 = scalar_select %p105, %s106, %s107
      %p111 = pneg %p105
      %p112 = scmp.eq.s32.totalorder %s15, 1
      %p113 = por %p111, %p112
      %p114 = scmp.ne.s32.totalorder %s106, %s109
      %p115 = scmp.eq.s32.totalorder %s15, 0
      %p116 = por %p114, %p115
      %p117 = scmp.ne.s32.totalorder %s106, %s109
      %p118 = scmp.eq.s32.totalorder %s20, 1
      %p119 = por %p117, %p118
      %p120 = scmp.ne.s32.totalorder %s109, %s110
      %p121 = scmp.eq.s32.totalorder %s20, 0
      %p122 = por %p120, %p121
      %p123 = scmp.ne.s32.totalorder %s109, %s110
      %p124 = scmp.eq.s32.totalorder %s21, 1
      %p125 = por %p123, %p124
      %p127 = scmp.ne.s32.totalorder %s110, %s126
      %p128 = scmp.eq.s32.totalorder %s21, 0
      %p129 = por %p127, %p128
      %p130 = scmp.le.s32.totalorder 1, %s15
      %p131 = scmp.lt.s32.totalorder %s15, 3
      %p132 = pnand %p130, %p131
      %p133 = pneg %p132
      // Predicated region
      $region9: #{tpu_custom_call.1} parent=5 // pred_check
        _
      $region10: #{tpu_custom_call.1} parent=5 // pred_check_branch
        %135 = sbr.rel (%p132) target = $region12
      $region11: #{tpu_custom_call.1} parent=5 // pred_region
        %s136 = ssub.s32 %s15, 1
        // Predicated region
        $region13: #{tpu_custom_call.1} parent=11 // pred_check
          %p137 = pneg %p92
        $region14: #{tpu_custom_call.1} parent=11 // pred_check_branch
          %139 = sbr.rel (%p137) target = $region16
        $region15: #{tpu_custom_call.1} parent=11 // pred_region
          %141 = vsyncadd [#allocation6], 0
          %s142 = sadd.s32 %s26, %s25
          %s143 = smul.addr %s142, 2
          %s144 = scalar_lea.hbm %s1, %s143
          %s146 = sshll.u32 %s144, 4
          %s147 = int_to_ptr.hbm [resolvable:$true] %s146
          %s148 = sshll.u32 [#allocation5], 4
          %s149 = int_to_ptr.vmem [resolvable:$true] %s148
          %151 = dma.hbm_to_vmem [thread:$0]  %s147, 32, %s149, [#allocation6]
        $region16: #{tpu_custom_call.1} parent=11 // pred_fallthru
          _
      $region12: #{tpu_custom_call.1} parent=5 // pred_fallthru
        _
      %p152 = scmp.lt.s32.totalorder %s15, 2
      // Predicated region
      $region17: #{tpu_custom_call.1} parent=5 // pred_check
        %p153 = pneg %p152
      $region18: #{tpu_custom_call.1} parent=5 // pred_check_branch
        %155 = sbr.rel (%p153) target = $region20
      $region19: #{tpu_custom_call.1} parent=5 // pred_region
        // Predicated region
        $region21: #{tpu_custom_call.1} parent=19 // pred_check
          %p156 = pneg %p58
        $region22: #{tpu_custom_call.1} parent=19 // pred_check_branch
          %158 = sbr.rel (%p156) target = $region24
        $region23: #{tpu_custom_call.1} parent=19 // pred_region
          %s159 = sand.u32 %s48, 1
          %s160 = scalar_lea.sflag [#allocation3], %s159
          %s161 = sand.u32 %s48, 1
          %s162 = smul.addr %s161, 2
          %s163 = scalar_lea.vmem [#allocation2], %s162
          %165 = vsyncadd %s160, 0
          %s166 = sadd.s32 %s23, %s22
          %s167 = sadd.s32 %s166, %s24
          %s168 = smul.addr %s167, 2
          %s169 = scalar_lea.hbm %s0, %s168
          %s171 = sshll.u32 %s169, 4
          %s172 = int_to_ptr.hbm [resolvable:$true] %s171
          %s173 = sshll.u32 %s163, 4
          %s174 = int_to_ptr.vmem [resolvable:$true] %s173
          %176 = dma.hbm_to_vmem [thread:$0]  %s172, 32, %s174, %s160
        $region24: #{tpu_custom_call.1} parent=19 // pred_fallthru
          _
      $region20: #{tpu_custom_call.1} parent=5 // pred_fallthru
        _
      %p177 = scmp.le.s32.totalorder 1, %s15
      %p178 = scmp.lt.s32.totalorder %s15, 3
      %p179 = pnand %p177, %p178
      %p180 = pneg %p179
      // Predicated region
      $region25: #{tpu_custom_call.1} parent=5 // pred_check
        _
      $region26: #{tpu_custom_call.1} parent=5 // pred_check_branch
        %182 = sbr.rel (%p179) target = $region28
      $region27: #{tpu_custom_call.1} parent=5 // pred_region
        %s183 = ssub.s32 %s15, 1
        %s184 = sand.u32 %s51, 1
        %s185 = scalar_lea.sflag [#allocation3], %s184
        %s186 = sand.u32 %s51, 1
        %s187 = smul.addr %s186, 2
        %s188 = scalar_lea.vmem [#allocation2], %s187
        // Predicated region
        $region29: #{tpu_custom_call.1} parent=27 // pred_check
          %p189 = pneg %p64
        $region30: #{tpu_custom_call.1} parent=27 // pred_check_branch
          %191 = sbr.rel (%p189) target = $region32
        $region31: #{tpu_custom_call.1} parent=27 // pred_region
          %193 = dma.done %s185, 32
        $region32: #{tpu_custom_call.1} parent=27 // pred_fallthru
          _
        // Predicated region
        $region33: #{tpu_custom_call.1} parent=27 // pred_check
          %p194 = pneg %p92
        $region34: #{tpu_custom_call.1} parent=27 // pred_check_branch
          %196 = sbr.rel (%p194) target = $region36
        $region35: #{tpu_custom_call.1} parent=27 // pred_region
          %198 = dma.done [#allocation6], 32
        $region36: #{tpu_custom_call.1} parent=27 // pred_fallthru
          _
        %s199 = sand.u32 %s51, 1
        %s200 = scalar_lea.sflag [#allocation3], %s199
        %s201 = sand.u32 %s51, 1
        %s202 = smul.addr %s201, 2
        %s203 = scalar_lea.vmem [#allocation2], %s202
        %p204 = pneg %p64
        %p205 = pneg %p61
        %p206 = pneg %p92
        %p207 = pneg %p89
        %p208 = pneg %p122
        %p209 = pneg %p119
        %s210 = sand.u32 %s109, 1
        %s211 = scalar_lea.sflag [#allocation4], %s210
        %s212 = sand.u32 %s109, 1
        %s213 = smul.addr %s212, 2
        %s214 = scalar_lea.vmem [#allocation7], %s213
        %v215 = vld [vmem:[%s188] sm:$0x3]
        %v216 = vld [vmem:[#allocation5] sm:$0x3]
        %v217 = vadd.f32 %v215, %v216
        %218 = vst [vmem:[%s214] sm:$0x3] %v217
        %s219 = sand.u32 %s109, 1
        %s220 = scalar_lea.sflag [#allocation4], %s219
        %s221 = sand.u32 %s109, 1
        %s222 = smul.addr %s221, 2
        %s223 = scalar_lea.vmem [#allocation7], %s222
        // Predicated region
        $region37: #{tpu_custom_call.1} parent=27 // pred_check
          %p224 = pneg %p119
        $region38: #{tpu_custom_call.1} parent=27 // pred_check_branch
          %226 = sbr.rel (%p224) target = $region40
        $region39: #{tpu_custom_call.1} parent=27 // pred_region
          %228 = vsyncadd %s220, 0
          %s229 = sadd.s32 %s26, %s25
          %s230 = sadd.s32 %s229, %s27
          %s231 = smul.addr %s230, 2
          %s232 = scalar_lea.hbm %s2, %s231
          %s234 = sshll.u32 %s223, 4
          %s235 = int_to_ptr.vmem [resolvable:$true] %s234
          %s236 = sshll.u32 %s232, 4
          %s237 = int_to_ptr.hbm [resolvable:$true] %s236
          %239 = dma.vmem_to_hbm [thread:$0]  %s235, 32, %s237, %s220
        $region40: #{tpu_custom_call.1} parent=27 // pred_fallthru
          _
      $region28: #{tpu_custom_call.1} parent=5 // pred_fallthru
        _
      %p240 = scmp.le.s32.totalorder 2, %s15
      // Predicated region
      $region41: #{tpu_custom_call.1} parent=5 // pred_check
        %p241 = pneg %p240
      $region42: #{tpu_custom_call.1} parent=5 // pred_check_branch
        %243 = sbr.rel (%p241) target = $region44
      $region43: #{tpu_custom_call.1} parent=5 // pred_region
        %s244 = ssub.s32 %s15, 2
        // Predicated region
        $region45: #{tpu_custom_call.1} parent=43 // pred_check
          %p245 = pneg %p125
        $region46: #{tpu_custom_call.1} parent=43 // pred_check_branch
          %247 = sbr.rel (%p245) target = $region48
        $region47: #{tpu_custom_call.1} parent=43 // pred_region
          %s248 = sand.u32 %s110, 1
          %s249 = scalar_lea.sflag [#allocation4], %s248
          %s250 = sand.u32 %s110, 1
          %s251 = smul.addr %s250, 2
          %s252 = scalar_lea.vmem [#allocation7], %s251
          %254 = dma.done %s249, 32
        $region48: #{tpu_custom_call.1} parent=43 // pred_fallthru
          _
      $region44: #{tpu_custom_call.1} parent=5 // pred_fallthru
        _
    $region6: #{tpu_custom_call.1} parent=1 // loop_footer
      %s19 = sadd.s32 1, %s15
    $region7: #{tpu_custom_call.1} parent=1 // loop_footer_branch
      %14 = sbr.rel target = $region3
    $region8: #{tpu_custom_call.1} parent=1 // loop_exit
      _
    %255 = vsyncpa [#allocation3], 1
    %s256 = scalar_lea.sflag [#allocation3], 1
    %257 = vsyncpa %s256, 1
    %258 = vsyncpa [#allocation6], 1
    %259 = vsyncpa [#allocation4], 1
    %s260 = scalar_lea.sflag [#allocation4], 1
    %261 = vsyncpa %s260, 1

</llo_original>
